<compile_context>
chip_gen: v5e
topology: v5e:2x2
jax: 0.10.0
libtpu: 0.0.40
codegen_flags: <defaults>
</compile_context>

<pallas_src>
import math

import jax
import jax.numpy as jnp
from jax.experimental import pallas as pl
from jax.experimental.pallas import tpu as pltpu

MIN_LOGVAR = -10.0
MAX_LOGVAR = 2.0
LEAKY_SLOPE = 0.01


def _lstm_encoder_kernel(x_ref, h_ref, c_ref, eps_ref,
                         wfc_ref, bfc_ref,
                         wg_ref, bg_ref,
                         wh_ref, bh_ref,
                         zml_ref, hn_ref, cn_ref):
    H = hn_ref.shape[-1]
    Z = eps_ref.shape[-1]

    # fc + leaky_relu (bf16 operands, f32 accumulation on the MXU)
    pre = jnp.dot(x_ref[...].astype(jnp.bfloat16), wfc_ref[...],
                  preferred_element_type=jnp.float32) + bfc_ref[...]
    xf = jnp.where(pre > 0, pre, LEAKY_SLOPE * pre)

    # fused LSTMCell gates: one MXU pass over [xf | h] @ [Wih ; Whh] + (bih+bhh)
    xh = jnp.concatenate([xf, h_ref[...]], axis=1).astype(jnp.bfloat16)
    gates = jnp.dot(xh, wg_ref[...],
                    preferred_element_type=jnp.float32) + bg_ref[...]

    # activations on the full 4H-wide vreg (two EUP passes), then slice out the
    # already-activated gate columns (PyTorch gate order: i, f, g, o)
    sig = jax.nn.sigmoid(gates)
    tnh = jnp.tanh(gates)
    i_g = sig[:, 0 * H:1 * H]
    f_g = sig[:, 1 * H:2 * H]
    g_g = tnh[:, 2 * H:3 * H]
    o_g = sig[:, 3 * H:4 * H]

    c_new = f_g * c_ref[...] + i_g * g_g
    h_new = o_g * jnp.tanh(c_new)

    # fused output heads: one matmul producing [mu | logvar]
    head = jnp.dot(h_new.astype(jnp.bfloat16), wh_ref[...],
                   preferred_element_type=jnp.float32) + bh_ref[...]
    mu = head[:, 0:Z]
    lv = jnp.clip(head[:, Z:2 * Z], MIN_LOGVAR, MAX_LOGVAR)
    z = mu + eps_ref[...] * jnp.exp(0.5 * lv)

    # lane-dense packed store of (z | mu | logvar); split in the wrapper
    zml_ref[...] = jnp.concatenate([z, mu, lv], axis=1)
    hn_ref[...] = h_new
    cn_ref[...] = c_new


def _nbytes(shape, dtype):
    return math.prod(shape) * jnp.dtype(dtype).itemsize


@jax.jit
def lstm_encoder_forward(inputs, h, c, packed, eps):
    B, DIN = inputs.shape
    H = h.shape[-1]
    Z = eps.shape[-1]
    f32 = jnp.float32
    bf16 = jnp.bfloat16

    # batch tile: a multiple of 8 sublanes that divides B when possible,
    # otherwise the whole (toy-sized) batch in a single block
    tb = math.gcd(B, 128) if B % 8 == 0 else B
    grid = (B // tb,)

    def row(cols):
        return pl.BlockSpec((tb, cols), lambda i: (i, 0))

    def const(rows, cols):
        # weights/biases: constant block index -> stay resident, no re-DMA
        return pl.BlockSpec((rows, cols), lambda i: (0, 0))

    in_specs = [
        row(DIN),             # x
        row(H),               # h
        row(H),               # c
        row(Z),               # eps
        const(DIN, H),        # wfc        (bf16)
        const(1, H),          # bfc
        const(2 * H, 4 * H),  # w_gates    (bf16)
        const(1, 4 * H),      # b_gates
        const(H, 2 * Z),      # w_head     (bf16)
        const(1, 2 * Z),      # b_head
    ]
    out_specs = (row(3 * Z), row(H), row(H))
    out_shape = (jax.ShapeDtypeStruct((B, 3 * Z), f32),
                 jax.ShapeDtypeStruct((B, H), f32),
                 jax.ShapeDtypeStruct((B, H), f32))

    # scoped VMEM sized to the actual (double-buffered) footprint
    blocks = [((tb, DIN), f32), ((tb, H), f32), ((tb, H), f32), ((tb, Z), f32),
              ((DIN, H), bf16), ((1, H), f32),
              ((2 * H, 4 * H), bf16), ((1, 4 * H), f32),
              ((H, 2 * Z), bf16), ((1, 2 * Z), f32),
              ((tb, 3 * Z), f32), ((tb, H), f32), ((tb, H), f32)]
    vmem_bytes = 2 * sum(_nbytes(s, d) for s, d in blocks) + (2 << 20)
    vmem_bytes = int(min(max(vmem_bytes, 4 << 20), 32 << 20))

    zml, hn, cn = pl.pallas_call(
        _lstm_encoder_kernel,
        grid=grid,
        in_specs=in_specs,
        out_specs=out_specs,
        out_shape=out_shape,
        # in-place recurrent state update: h -> h', c -> c'
        input_output_aliases={1: 1, 2: 2},
        compiler_params=pltpu.CompilerParams(
            dimension_semantics=("parallel",),
            vmem_limit_bytes=vmem_bytes),
    )(inputs, h, c, eps,
      packed["wfc"], packed["bfc"],
      packed["w_gates"], packed["b_gates"],
      packed["w_head"], packed["b_head"])

    z = zml[:, 0:Z]
    mu = zml[:, Z:2 * Z]
    logvar = zml[:, 2 * Z:3 * Z]
    return z, mu, logvar, (hn, cn)


def reference_forward(inputs, h, c, params, eps):
    """Pure-JAX f32 reference of the PyTorch forward pass."""
    pre = inputs @ params["wfc"] + params["bfc"]
    x = jnp.where(pre > 0, pre, LEAKY_SLOPE * pre)
    gates = x @ params["wih"] + params["bih"] + h @ params["whh"] + params["bhh"]
    H = h.shape[-1]
    i_g = jax.nn.sigmoid(gates[:, 0 * H:1 * H])
    f_g = jax.nn.sigmoid(gates[:, 1 * H:2 * H])
    g_g = jnp.tanh(gates[:, 2 * H:3 * H])
    o_g = jax.nn.sigmoid(gates[:, 3 * H:4 * H])
    c_new = f_g * c + i_g * g_g
    h_new = o_g * jnp.tanh(c_new)
    mu = h_new @ params["wmu"] + params["bmu"]
    logvar = jnp.clip(h_new @ params["wlv"] + params["blv"],
                      MIN_LOGVAR, MAX_LOGVAR)
    z = mu + eps * jnp.exp(0.5 * logvar)
    return z, mu, logvar, (h_new, c_new)


def init_params(key, input_dim, hidden_dim, z_dim):
    ks = jax.random.split(key, 10)
    s = 0.1
    f32 = jnp.float32
    return {
        # weights stored as (in, out) so the kernel does x @ W
        "wfc": (s * jax.random.normal(ks[0], (input_dim, hidden_dim))).astype(f32),
        "bfc": (s * jax.random.normal(ks[1], (1, hidden_dim))).astype(f32),
        "wih": (s * jax.random.normal(ks[2], (hidden_dim, 4 * hidden_dim))).astype(f32),
        "bih": (s * jax.random.normal(ks[3], (1, 4 * hidden_dim))).astype(f32),
        "whh": (s * jax.random.normal(ks[4], (hidden_dim, 4 * hidden_dim))).astype(f32),
        "bhh": (s * jax.random.normal(ks[5], (1, 4 * hidden_dim))).astype(f32),
        "wmu": (s * jax.random.normal(ks[6], (hidden_dim, z_dim))).astype(f32),
        "bmu": (s * jax.random.normal(ks[7], (1, z_dim))).astype(f32),
        "wlv": (s * jax.random.normal(ks[8], (hidden_dim, z_dim))).astype(f32),
        "blv": (s * jax.random.normal(ks[9], (1, z_dim))).astype(f32),
    }


def pack_params(p):
    """One-time parameter transform: fuse gate/head weights, bf16 for the MXU."""
    bf16 = jnp.bfloat16
    return {
        "wfc": p["wfc"].astype(bf16),
        "bfc": p["bfc"],
        "w_gates": jnp.concatenate([p["wih"], p["whh"]], axis=0).astype(bf16),
        "b_gates": p["bih"] + p["bhh"],
        "w_head": jnp.concatenate([p["wmu"], p["wlv"]], axis=1).astype(bf16),
        "b_head": jnp.concatenate([p["bmu"], p["blv"]], axis=1),
    }


if __name__ == "__main__":
    B, INPUT_DIM, HIDDEN, Z_DIM = 2, 16, 32, 8

    key = jax.random.PRNGKey(0)
    k_in, k_h, k_c, k_eps, k_par = jax.random.split(key, 5)

    inputs = jax.random.normal(k_in, (B, INPUT_DIM), dtype=jnp.float32)
    h0 = jax.random.normal(k_h, (B, HIDDEN), dtype=jnp.float32)
    c0 = jax.random.normal(k_c, (B, HIDDEN), dtype=jnp.float32)
    # eps generated outside the kernel (same role as th.randn_like(mu))
    eps = jax.random.normal(k_eps, (B, Z_DIM), dtype=jnp.float32)

    params = init_params(k_par, INPUT_DIM, HIDDEN, Z_DIM)
    packed = pack_params(params)

    z, mu, logvar, (hn, cn) = lstm_encoder_forward(inputs, h0, c0, packed, eps)
    jax.block_until_ready((z, mu, logvar, hn, cn))

    # correctness check vs pure-JAX f32 reference (bf16 MXU operands with f32
    # accumulation in the kernel -> relaxed tolerance)
    z_r, mu_r, lv_r, (hn_r, cn_r) = reference_forward(inputs, h0, c0, params, eps)
    TOL = dict(atol=5e-2, rtol=5e-2)
    assert jnp.allclose(z, z_r, **TOL)
    assert jnp.allclose(mu, mu_r, **TOL)
    assert jnp.allclose(logvar, lv_r, **TOL)
    assert jnp.allclose(hn, hn_r, **TOL)
    assert jnp.allclose(cn, cn_r, **TOL)

    print("KERNEL_OK")
</pallas_src>

<mosaic_0001>
module attributes {stable_mosaic.version = 11 : i64} {
  func.func @_lstm_encoder_kernel(%arg0: i32, %arg1: memref<2x16xf32, #tpu.memory_space<vmem>>, %arg2: memref<2x32xf32, #tpu.memory_space<vmem>>, %arg3: memref<2x32xf32, #tpu.memory_space<vmem>>, %arg4: memref<2x8xf32, #tpu.memory_space<vmem>>, %arg5: memref<16x32xbf16, #tpu.memory_space<vmem>>, %arg6: memref<1x32xf32, #tpu.memory_space<vmem>>, %arg7: memref<64x128xbf16, #tpu.memory_space<vmem>>, %arg8: memref<1x128xf32, #tpu.memory_space<vmem>>, %arg9: memref<32x16xbf16, #tpu.memory_space<vmem>>, %arg10: memref<1x16xf32, #tpu.memory_space<vmem>>, %arg11: memref<2x24xf32, #tpu.memory_space<vmem>>, %arg12: memref<2x32xf32, #tpu.memory_space<vmem>>, %arg13: memref<2x32xf32, #tpu.memory_space<vmem>>) attributes {dimension_semantics = [#tpu.dimension_semantics<parallel>], iteration_bounds = array<i64: 1>, scalar_prefetch = 0 : i64, scratch_operands = 0 : i64, tpu.core_type = #tpu.core_type<tc>, window_params = [{transform_indices = @transform_0, window_bounds = array<i64: 2, 16>}, {transform_indices = @transform_1, window_bounds = array<i64: 2, 32>}, {transform_indices = @transform_2, window_bounds = array<i64: 2, 32>}, {transform_indices = @transform_3, window_bounds = array<i64: 2, 8>}, {pipeline_mode = #tpu.pipeline_mode<synchronous>, transform_indices = @transform_4, window_bounds = array<i64: 16, 32>}, {pipeline_mode = #tpu.pipeline_mode<synchronous>, transform_indices = @transform_5, window_bounds = array<i64: 1, 32>}, {pipeline_mode = #tpu.pipeline_mode<synchronous>, transform_indices = @transform_6, window_bounds = array<i64: 64, 128>}, {pipeline_mode = #tpu.pipeline_mode<synchronous>, transform_indices = @transform_7, window_bounds = array<i64: 1, 128>}, {pipeline_mode = #tpu.pipeline_mode<synchronous>, transform_indices = @transform_8, window_bounds = array<i64: 32, 16>}, {pipeline_mode = #tpu.pipeline_mode<synchronous>, transform_indices = @transform_9, window_bounds = array<i64: 1, 16>}, {transform_indices = @transform_10, window_bounds = array<i64: 2, 24>}, {transform_indices = @transform_11, window_bounds = array<i64: 2, 32>}, {transform_indices = @transform_12, window_bounds = array<i64: 2, 32>}]} {
    %c0 = arith.constant 0 : index
    %c0_0 = arith.constant 0 : index
    %0 = vector.load %arg1[%c0, %c0_0] : memref<2x16xf32, #tpu.memory_space<vmem>>, vector<2x16xf32>
    %1 = arith.truncf %0 : vector<2x16xf32> to vector<2x16xbf16>
    %c0_1 = arith.constant 0 : index
    %c0_2 = arith.constant 0 : index
    %2 = vector.load %arg5[%c0_1, %c0_2] : memref<16x32xbf16, #tpu.memory_space<vmem>>, vector<16x32xbf16>
    %cst = arith.constant dense<0.000000e+00> : vector<2x32xf32>
    %3 = tpu.matmul %1, %2, %cst {dimension_numbers = #tpu.dot_dimension_numbers<[1], [0], [0], [1], [0, 0, 1, 1], [], []>} : vector<2x16xbf16>, vector<16x32xbf16>, vector<2x32xf32> -> vector<2x32xf32>
    %c0_3 = arith.constant 0 : index
    %c0_4 = arith.constant 0 : index
    %4 = vector.load %arg6[%c0_3, %c0_4] : memref<1x32xf32, #tpu.memory_space<vmem>>, vector<1x32xf32>
    %5 = vector.broadcast %4 : vector<1x32xf32> to vector<2x32xf32>
    %6 = arith.addf %3, %5 : vector<2x32xf32>
    %cst_5 = arith.constant 0.000000e+00 : f32
    %7 = vector.broadcast %cst_5 : f32 to vector<2x32xf32>
    %8 = arith.cmpf ogt, %6, %7 : vector<2x32xf32>
    %cst_6 = arith.constant 0.00999999977 : f32
    %9 = vector.broadcast %cst_6 : f32 to vector<2x32xf32>
    %10 = arith.mulf %9, %6 : vector<2x32xf32>
    %11 = arith.select %8, %6, %10 : vector<2x32xi1>, vector<2x32xf32>
    %c0_7 = arith.constant 0 : index
    %c0_8 = arith.constant 0 : index
    %12 = vector.load %arg2[%c0_7, %c0_8] : memref<2x32xf32, #tpu.memory_space<vmem>>, vector<2x32xf32>
    %13 = tpu.concatenate %11, %12 in 1 : vector<2x32xf32>, vector<2x32xf32> -> vector<2x64xf32>
    %14 = arith.truncf %13 : vector<2x64xf32> to vector<2x64xbf16>
    %c0_9 = arith.constant 0 : index
    %c0_10 = arith.constant 0 : index
    %15 = vector.load %arg7[%c0_9, %c0_10] : memref<64x128xbf16, #tpu.memory_space<vmem>>, vector<64x128xbf16>
    %cst_11 = arith.constant dense<0.000000e+00> : vector<2x128xf32>
    %16 = tpu.matmul %14, %15, %cst_11 {dimension_numbers = #tpu.dot_dimension_numbers<[1], [0], [0], [1], [0, 0, 1, 1], [], []>} : vector<2x64xbf16>, vector<64x128xbf16>, vector<2x128xf32> -> vector<2x128xf32>
    %c0_12 = arith.constant 0 : index
    %c0_13 = arith.constant 0 : index
    %17 = vector.load %arg8[%c0_12, %c0_13] : memref<1x128xf32, #tpu.memory_space<vmem>>, vector<1x128xf32>
    %18 = vector.broadcast %17 : vector<1x128xf32> to vector<2x128xf32>
    %19 = arith.addf %16, %18 : vector<2x128xf32>
    %20 = arith.negf %19 : vector<2x128xf32>
    %21 = math.exp %20 : vector<2x128xf32>
    %cst_14 = arith.constant 1.000000e+00 : f32
    %22 = vector.broadcast %cst_14 : f32 to vector<2x128xf32>
    %23 = arith.addf %22, %21 : vector<2x128xf32>
    %24 = arith.divf %22, %23 : vector<2x128xf32>
    %25 = math.tanh %19 : vector<2x128xf32>
    %26 = vector.extract_strided_slice %24 {offsets = [0, 0], sizes = [2, 32], strides = [1, 1]} : vector<2x128xf32> to vector<2x32xf32>
    %27 = vector.extract_strided_slice %24 {offsets = [0, 32], sizes = [2, 32], strides = [1, 1]} : vector<2x128xf32> to vector<2x32xf32>
    %28 = vector.extract_strided_slice %25 {offsets = [0, 64], sizes = [2, 32], strides = [1, 1]} : vector<2x128xf32> to vector<2x32xf32>
    %29 = vector.extract_strided_slice %24 {offsets = [0, 96], sizes = [2, 32], strides = [1, 1]} : vector<2x128xf32> to vector<2x32xf32>
    %c0_15 = arith.constant 0 : index
    %c0_16 = arith.constant 0 : index
    %30 = vector.load %arg3[%c0_15, %c0_16] : memref<2x32xf32, #tpu.memory_space<vmem>>, vector<2x32xf32>
    %31 = arith.mulf %27, %30 : vector<2x32xf32>
    %32 = arith.mulf %26, %28 : vector<2x32xf32>
    %33 = arith.addf %31, %32 : vector<2x32xf32>
    %34 = math.tanh %33 : vector<2x32xf32>
    %35 = arith.mulf %29, %34 : vector<2x32xf32>
    %36 = arith.truncf %35 : vector<2x32xf32> to vector<2x32xbf16>
    %c0_17 = arith.constant 0 : index
    %c0_18 = arith.constant 0 : index
    %37 = vector.load %arg9[%c0_17, %c0_18] : memref<32x16xbf16, #tpu.memory_space<vmem>>, vector<32x16xbf16>
    %cst_19 = arith.constant dense<0.000000e+00> : vector<2x16xf32>
    %38 = tpu.matmul %36, %37, %cst_19 {dimension_numbers = #tpu.dot_dimension_numbers<[1], [0], [0], [1], [0, 0, 1, 1], [], []>} : vector<2x32xbf16>, vector<32x16xbf16>, vector<2x16xf32> -> vector<2x16xf32>
    %c0_20 = arith.constant 0 : index
    %c0_21 = arith.constant 0 : index
    %39 = vector.load %arg10[%c0_20, %c0_21] : memref<1x16xf32, #tpu.memory_space<vmem>>, vector<1x16xf32>
    %40 = vector.broadcast %39 : vector<1x16xf32> to vector<2x16xf32>
    %41 = arith.addf %38, %40 : vector<2x16xf32>
    %42 = vector.extract_strided_slice %41 {offsets = [0, 0], sizes = [2, 8], strides = [1, 1]} : vector<2x16xf32> to vector<2x8xf32>
    %43 = vector.extract_strided_slice %41 {offsets = [0, 8], sizes = [2, 8], strides = [1, 1]} : vector<2x16xf32> to vector<2x8xf32>
    %cst_22 = arith.constant -1.000000e+01 : f32
    %cst_23 = arith.constant 2.000000e+00 : f32
    %44 = vector.broadcast %cst_22 : f32 to vector<2x8xf32>
    %45 = arith.maximumf %44, %43 : vector<2x8xf32>
    %46 = vector.broadcast %cst_23 : f32 to vector<2x8xf32>
    %47 = arith.minimumf %46, %45 : vector<2x8xf32>
    %c0_24 = arith.constant 0 : index
    %c0_25 = arith.constant 0 : index
    %48 = vector.load %arg4[%c0_24, %c0_25] : memref<2x8xf32, #tpu.memory_space<vmem>>, vector<2x8xf32>
    %cst_26 = arith.constant 5.000000e-01 : f32
    %49 = vector.broadcast %cst_26 : f32 to vector<2x8xf32>
    %50 = arith.mulf %49, %47 : vector<2x8xf32>
    %51 = math.exp %50 : vector<2x8xf32>
    %52 = arith.mulf %48, %51 : vector<2x8xf32>
    %53 = arith.addf %42, %52 : vector<2x8xf32>
    %54 = tpu.concatenate %53, %42, %47 in 1 : vector<2x8xf32>, vector<2x8xf32>, vector<2x8xf32> -> vector<2x24xf32>
    %c0_27 = arith.constant 0 : index
    %c0_28 = arith.constant 0 : index
    %55 = vector.load %arg11[%c0_27, %c0_28] : memref<2x24xf32, #tpu.memory_space<vmem>>, vector<2x24xf32>
    tpu.vector_store %arg11[%c0_27, %c0_28], %54 {strides = array<i32>} : memref<2x24xf32, #tpu.memory_space<vmem>>, vector<2x24xf32>,
    %c0_29 = arith.constant 0 : index
    %c0_30 = arith.constant 0 : index
    %56 = vector.load %arg12[%c0_29, %c0_30] : memref<2x32xf32, #tpu.memory_space<vmem>>, vector<2x32xf32>
    tpu.vector_store %arg12[%c0_29, %c0_30], %35 {strides = array<i32>} : memref<2x32xf32, #tpu.memory_space<vmem>>, vector<2x32xf32>,
    %c0_31 = arith.constant 0 : index
    %c0_32 = arith.constant 0 : index
    %57 = vector.load %arg13[%c0_31, %c0_32] : memref<2x32xf32, #tpu.memory_space<vmem>>, vector<2x32xf32>
    tpu.vector_store %arg13[%c0_31, %c0_32], %33 {strides = array<i32>} : memref<2x32xf32, #tpu.memory_space<vmem>>, vector<2x32xf32>,
    return
  }
  func.func @transform_0(%arg0: i32) -> (i32, i32) {
    %c0_i32 = arith.constant 0 : i32
    %c0_i32_0 = arith.constant 0 : i32
    return %arg0, %c0_i32 : i32, i32
  }
  func.func @transform_1(%arg0: i32) -> (i32, i32) {
    %c0_i32 = arith.constant 0 : i32
    %c0_i32_0 = arith.constant 0 : i32
    return %arg0, %c0_i32 : i32, i32
  }
  func.func @transform_2(%arg0: i32) -> (i32, i32) {
    %c0_i32 = arith.constant 0 : i32
    %c0_i32_0 = arith.constant 0 : i32
    return %arg0, %c0_i32 : i32, i32
  }
  func.func @transform_3(%arg0: i32) -> (i32, i32) {
    %c0_i32 = arith.constant 0 : i32
    %c0_i32_0 = arith.constant 0 : i32
    return %arg0, %c0_i32 : i32, i32
  }
  func.func @transform_4(%arg0: i32) -> (i32, i32) {
    %c0_i32 = arith.constant 0 : i32
    %c0_i32_0 = arith.constant 0 : i32
    %c0_i32_1 = arith.constant 0 : i32
    return %c0_i32, %c0_i32_0 : i32, i32
  }
  func.func @transform_5(%arg0: i32) -> (i32, i32) {
    %c0_i32 = arith.constant 0 : i32
    %c0_i32_0 = arith.constant 0 : i32
    %c0_i32_1 = arith.constant 0 : i32
    return %c0_i32, %c0_i32_0 : i32, i32
  }
  func.func @transform_6(%arg0: i32) -> (i32, i32) {
    %c0_i32 = arith.constant 0 : i32
    %c0_i32_0 = arith.constant 0 : i32
    %c0_i32_1 = arith.constant 0 : i32
    return %c0_i32, %c0_i32_0 : i32, i32
  }
  func.func @transform_7(%arg0: i32) -> (i32, i32) {
    %c0_i32 = arith.constant 0 : i32
    %c0_i32_0 = arith.constant 0 : i32
    %c0_i32_1 = arith.constant 0 : i32
    return %c0_i32, %c0_i32_0 : i32, i32
  }
  func.func @transform_8(%arg0: i32) -> (i32, i32) {
    %c0_i32 = arith.constant 0 : i32
    %c0_i32_0 = arith.constant 0 : i32
    %c0_i32_1 = arith.constant 0 : i32
    return %c0_i32, %c0_i32_0 : i32, i32
  }
  func.func @transform_9(%arg0: i32) -> (i32, i32) {
    %c0_i32 = arith.constant 0 : i32
    %c0_i32_0 = arith.constant 0 : i32
    %c0_i32_1 = arith.constant 0 : i32
    return %c0_i32, %c0_i32_0 : i32, i32
  }
  func.func @transform_10(%arg0: i32) -> (i32, i32) {
    %c0_i32 = arith.constant 0 : i32
    %c0_i32_0 = arith.constant 0 : i32
    return %arg0, %c0_i32 : i32, i32
  }
  func.func @transform_11(%arg0: i32) -> (i32, i32) {
    %c0_i32 = arith.constant 0 : i32
    %c0_i32_0 = arith.constant 0 : i32
    return %arg0, %c0_i32 : i32, i32
  }
  func.func @transform_12(%arg0: i32) -> (i32, i32) {
    %c0_i32 = arith.constant 0 : i32
    %c0_i32_0 = arith.constant 0 : i32
    return %arg0, %c0_i32 : i32, i32
  }
}

</mosaic_0001>

<llo_original>
// kernel: lstm_encoder_forward.1
$region0: #{lstm_encoder_forward.1}
  #allocation0 [shape = 'u32[]', space=smem, size = 0x4, offset = 0x4, fixed_abs, tag = 'smem constant byte address 0x4 - core index']
  #allocation1 [shape = 'u32[72,128]{1,0:T(1,128)}', space=vmem, size = 0x9000, scoped, tag = 'internal scratch']
  %s0 = inlined_call_operand.vmem [shape: f32[2,16], index: 0, kind: input, shape index: {}]
  %s1 = inlined_call_operand.vmem [shape: f32[2,32], index: 1, kind: input, shape index: {}, may-alias: {1,11}]
  %s2 = inlined_call_operand.vmem [shape: f32[2,32], index: 2, kind: input, shape index: {}, may-alias: {2,12}]
  %s3 = inlined_call_operand.vmem [shape: f32[2,8], index: 3, kind: input, shape index: {}]
  %s4 = inlined_call_operand.vmem [shape: bf16[16,32], index: 4, kind: input, shape index: {}]
  %s5 = inlined_call_operand.vmem [shape: f32[1,32], index: 5, kind: input, shape index: {}]
  %s6 = inlined_call_operand.hbm [shape: bf16[64,128], index: 6, kind: input, shape index: {}]
  %s7 = inlined_call_operand.vmem [shape: f32[1,128], index: 7, kind: input, shape index: {}]
  %s8 = inlined_call_operand.vmem [shape: bf16[32,16], index: 8, kind: input, shape index: {}]
  %s9 = inlined_call_operand.vmem [shape: f32[1,16], index: 9, kind: input, shape index: {}]
  %s10 = inlined_call_operand.vmem [shape: f32[2,24], index: 10, kind: output, shape index: {0}]
  %s11 = inlined_call_operand.vmem [shape: f32[2,32], index: 11, kind: output, shape index: {1}, may-alias: {1,11}]
  %s12 = inlined_call_operand.vmem [shape: f32[2,32], index: 12, kind: output, shape index: {2}, may-alias: {2,12}]
  %13 = xla_tuple %s10, %s11, %s12
  %s14 = sld [smem:[#allocation0]]
  $region70: #{lstm_encoder_forward.1} parent=0
    _
  %s16 = ssub.s32 1, %s14
  %s17 = scalar_select 0, %s16, %s14
  $region1: #{lstm_encoder_forward.1} parent=0
    #allocation2 [shape = 'u8[16384]{0}', space=vmem, size = 0x4000, scoped, tag = 'input window, operand 6, single buffered']
    #allocation3 [shape = 's32[1]{0}', space=sflag, size = 0x4, scoped, tag = 'scoped memory for lstm_encoder_forward.1']
    %18 = vsyncpa [#allocation3], 0
    // Predicated region
    $region2: #{lstm_encoder_forward.1} parent=1 // pred_check
      _
    $region3: #{lstm_encoder_forward.1} parent=1 // pred_check_branch
      %20 = sbr.rel (0) target = $region5
    $region4: #{lstm_encoder_forward.1} parent=1 // pred_region
      _
    $region5: #{lstm_encoder_forward.1} parent=1 // pred_fallthru
      _
    // Predicated region
    $region6: #{lstm_encoder_forward.1} parent=1 // pred_check
      _
    $region7: #{lstm_encoder_forward.1} parent=1 // pred_check_branch
      %22 = sbr.rel (0) target = $region9
    $region8: #{lstm_encoder_forward.1} parent=1 // pred_region
      _
    $region9: #{lstm_encoder_forward.1} parent=1 // pred_fallthru
      _
    // Predicated region
    $region10: #{lstm_encoder_forward.1} parent=1 // pred_check
      _
    $region11: #{lstm_encoder_forward.1} parent=1 // pred_check_branch
      %24 = sbr.rel (0) target = $region13
    $region12: #{lstm_encoder_forward.1} parent=1 // pred_region
      _
    $region13: #{lstm_encoder_forward.1} parent=1 // pred_fallthru
      _
    // Predicated region
    $region14: #{lstm_encoder_forward.1} parent=1 // pred_check
      _
    $region15: #{lstm_encoder_forward.1} parent=1 // pred_check_branch
      %26 = sbr.rel (0) target = $region17
    $region16: #{lstm_encoder_forward.1} parent=1 // pred_region
      _
    $region17: #{lstm_encoder_forward.1} parent=1 // pred_fallthru
      _
    // Predicated region
    $region18: #{lstm_encoder_forward.1} parent=1 // pred_check
      _
    $region19: #{lstm_encoder_forward.1} parent=1 // pred_check_branch
      %28 = sbr.rel (0) target = $region21
    $region20: #{lstm_encoder_forward.1} parent=1 // pred_region
      _
    $region21: #{lstm_encoder_forward.1} parent=1 // pred_fallthru
      _
    // Predicated region
    $region22: #{lstm_encoder_forward.1} parent=1 // pred_check
      _
    $region23: #{lstm_encoder_forward.1} parent=1 // pred_check_branch
      %30 = sbr.rel (0) target = $region25
    $region24: #{lstm_encoder_forward.1} parent=1 // pred_region
      _
    $region25: #{lstm_encoder_forward.1} parent=1 // pred_fallthru
      _
    // Predicated region
    $region26: #{lstm_encoder_forward.1} parent=1 // pred_check
      _
    $region27: #{lstm_encoder_forward.1} parent=1 // pred_check_branch
      %32 = sbr.rel (0) target = $region29
    $region28: #{lstm_encoder_forward.1} parent=1 // pred_region
      %34 = vsyncadd [#allocation3], 0
      %s35 = sshll.u32 %s6, 4
      %s36 = int_to_ptr.hbm [resolvable:$true] %s35
      %s37 = sshll.u32 [#allocation2], 4
      %s38 = int_to_ptr.vmem [resolvable:$true] %s37
      %43 = dma.hbm_to_vmem [thread:$0]  %s36, 512, %s38, [#allocation3], 64, 64, 4
    $region29: #{lstm_encoder_forward.1} parent=1 // pred_fallthru
      _
    // Predicated region
    $region30: #{lstm_encoder_forward.1} parent=1 // pred_check
      _
    $region31: #{lstm_encoder_forward.1} parent=1 // pred_check_branch
      %45 = sbr.rel (0) target = $region33
    $region32: #{lstm_encoder_forward.1} parent=1 // pred_region
      _
    $region33: #{lstm_encoder_forward.1} parent=1 // pred_fallthru
      _
    // Predicated region
    $region34: #{lstm_encoder_forward.1} parent=1 // pred_check
      _
    $region35: #{lstm_encoder_forward.1} parent=1 // pred_check_branch
      %47 = sbr.rel (0) target = $region37
    $region36: #{lstm_encoder_forward.1} parent=1 // pred_region
      _
    $region37: #{lstm_encoder_forward.1} parent=1 // pred_fallthru
      _
    // Predicated region
    $region38: #{lstm_encoder_forward.1} parent=1 // pred_check
      _
    $region39: #{lstm_encoder_forward.1} parent=1 // pred_check_branch
      %49 = sbr.rel (0) target = $region41
    $region40: #{lstm_encoder_forward.1} parent=1 // pred_region
      _
    $region41: #{lstm_encoder_forward.1} parent=1 // pred_fallthru
      _
    // Predicated region
    $region42: #{lstm_encoder_forward.1} parent=1 // pred_check
      _
    $region43: #{lstm_encoder_forward.1} parent=1 // pred_check_branch
      %51 = sbr.rel (0) target = $region45
    $region44: #{lstm_encoder_forward.1} parent=1 // pred_region
      %53 = dma.done [#allocation3], 512
    $region45: #{lstm_encoder_forward.1} parent=1 // pred_fallthru
      _
    %v55 = vld [vmem:[%s0] sm:$0x3]
    %v56 = vpack.c.bf16 %v55, %v55
    %v57 = vld [vmem:[%s4] sm:$0xf]
    %v58 = vld [vmem:[%s4 + $0x4] sm:$0xf]
    %v59 = vld [vmem:[%s5] sm:$0x1]
    %v61 = vperm.slane %v59, 0
    %v65 = vunpack.c.l.b16 %v57
    %v66 = vunpack.c.l.b16 %v58
    %v67 = vpack.c.b16 %v66, %v65
    %vm69 = vcmask 130048
    %v71 = vsel %vm69, %v56, 0
    %73 = vmatpush.bf16.msra.mxu0 0
    %74 = vmatpush.bf16.msra.mxu0 0
    %75 = vmatpush.bf16.msra.mxu0 0
    %76 = vmatpush.bf16.msra.mxu0 0
    %77 = vmatpush.bf16.msra.mxu0 0
    %78 = vmatpush.bf16.msra.mxu0 0
    %79 = vmatpush.bf16.msra.mxu0 0
    %80 = vmatpush.bf16.msra.mxu0 %v67
    %81 = vmatmul.bf16.gmra.mxu0 %v71
    %v82 = vpop.f32.mrf.mxu0
    %v83 = vadd.f32 %v61, %v82
    %v84 = vpop.f32.mrf.mxu0
    %85 = vdwg.mxu0
    %vm86 = vcmp.gt.f32.partialorder %v83, 0.0
    %v87 = vmul.f32 %v83, 0.01
    %v88 = vsel %vm86, %v83, %v87
    %v89 = vld [vmem:[%s1] sm:$0x3]
    %91 = vrot.lane.b32.xlu0 %v89, 32
    %v92 = vpop.permute.xlu0 %91
    %vm94 = vcmask 261120
    %v95 = vsel %vm94, %v88, %v92
    %v96 = vpack.c.bf16 %v95, %v95
    %v97 = vld [vmem:[#allocation2] sm:$0xf]
    %v98 = vld [vmem:[#allocation2 + $0x4] sm:$0xf]
    %v99 = vld [vmem:[#allocation2 + $0x8] sm:$0xf]
    %v100 = vld [vmem:[#allocation2 + $0xc] sm:$0xf]
    %v101 = vld [vmem:[#allocation2 + $0x10] sm:$0xf]
    %v102 = vld [vmem:[#allocation2 + $0x14] sm:$0xf]
    %v103 = vld [vmem:[#allocation2 + $0x18] sm:$0xf]
    %v104 = vld [vmem:[#allocation2 + $0x1c] sm:$0xf]
    %v105 = vld [vmem:[%s7] sm:$0x1]
    %v107 = vperm.slane %v105, 0
    %v117 = vunpack.c.l.b16 %v97
    %v118 = vunpack.c.l.b16 %v98
    %v119 = vunpack.c.l.b16 %v99
    %v120 = vunpack.c.l.b16 %v100
    %v121 = vunpack.c.l.b16 %v101
    %v122 = vunpack.c.l.b16 %v102
    %v123 = vunpack.c.l.b16 %v103
    %v124 = vunpack.c.l.b16 %v104
    %v125 = vpack.c.b16 %v118, %v117
    %v126 = vpack.c.b16 %v120, %v119
    %v127 = vpack.c.b16 %v122, %v121
    %v128 = vpack.c.b16 %v124, %v123
    %vm133 = vcmask 523264
    %v135 = vsel %vm133, %v96, 0
    %137 = vmatpush.bf16.msra.mxu0 0
    %138 = vmatpush.bf16.msra.mxu0 0
    %139 = vmatpush.bf16.msra.mxu0 0
    %140 = vmatpush.bf16.msra.mxu0 0
    %141 = vmatpush.bf16.msra.mxu0 %v128
    %142 = vmatpush.bf16.msra.mxu0 %v127
    %143 = vmatpush.bf16.msra.mxu0 %v126
    %144 = vmatpush.bf16.msra.mxu0 %v125
    %145 = vmatmul.bf16.gmra.mxu0 %v135
    %v146 = vpop.f32.mrf.mxu0
    %v147 = vadd.f32 %v107, %v146
    %v148 = vpop.f32.mrf.mxu0
    %149 = vdwg.mxu0
    %v150 = vxor.u32 %v147, 2147483648
    %v151 = vmul.f32 %v150, 1.442695
    %v152 = vpow.pop %v151
    %v153 = vadd.f32 %v152, 1.0
    %v154 = vrcp.pop %v153
    %v155 = vmul.f32 %v153, %v154
    %v156 = vsub.f32 1.0, %v155
    %v157 = vmul.f32 %v154, %v156
    %v158 = vadd.f32 %v154, %v157
    %vm159 = vweird.f32 %v153
    %vm160 = vweird.f32 %v154
    %vm161 = vmor %vm159, %vm160
    %v162 = vsel %vm161, %v154, %v158
    %v163 = vand.u32 2147483647, %v153
    %vm164 = vcmp.eq.f32.partialorder %v163, 8.507059e+37
    %v165 = vand.u32 %v153, 2147483648
    %v166 = vor.u32 1.1754944e-38, %v165
    %v167 = vsel %vm164, %v166, %v162
    %v168 = vmul.f32 1.0, %v167
    %v169 = vtanh.pop %v147
    %v170 = vld [vmem:[%s2] sm:$0x3]
    %172 = vrot.lane.b32.xlu0 %v170, 32
    %v173 = vpop.permute.xlu0 %172
    %v175 = vmul.f32 %v168, %v173
    %177 = vrot.lane.b32.xlu0 %v169, 64
    %v178 = vpop.permute.xlu0 %177
    %v180 = vmul.f32 %v168, %v178
    %182 = vrot.lane.b32.xlu0 %v180, 32
    %v183 = vpop.permute.xlu0 %182
    %v185 = vadd.f32 %v175, %v183
    %v186 = vtanh.pop %v185
    %188 = vrot.lane.b32.xlu0 %v186, 64
    %v189 = vpop.permute.xlu0 %188
    %v191 = vmul.f32 %v168, %v189
    %v192 = vpack.c.bf16 %v191, %v191
    %v193 = vld [vmem:[%s8] sm:$0xf]
    %v194 = vld [vmem:[%s8 + $0x4] sm:$0xf]
    %v195 = vld [vmem:[%s8 + $0x8] sm:$0xf]
    %v196 = vld [vmem:[%s8 + $0xc] sm:$0xf]
    %v197 = vld [vmem:[%s9] sm:$0x1]
    %v199 = vperm.slane %v197, 0
    %202 = vrot.lane.b32.xlu0 %v192, 32
    %v203 = vpop.permute.xlu0 %202
    %v208 = vunpack.c.l.b16 %v193
    %v209 = vunpack.c.l.b16 %v194
    %v210 = vunpack.c.l.b16 %v195
    %v211 = vunpack.c.l.b16 %v196
    %v212 = vpack.c.b16 %v209, %v208
    %v213 = vpack.c.b16 %v211, %v210
    %v217 = vsel %vm94, %v203, 0
    %219 = vmatpush.bf16.msra.mxu0 0
    %220 = vmatpush.bf16.msra.mxu0 0
    %221 = vmatpush.bf16.msra.mxu0 0
    %222 = vmatpush.bf16.msra.mxu0 0
    %223 = vmatpush.bf16.msra.mxu0 0
    %224 = vmatpush.bf16.msra.mxu0 0
    %225 = vmatpush.bf16.msra.mxu0 %v213
    %226 = vmatpush.bf16.msra.mxu0 %v212
    %227 = vmatmul.bf16.gmra.mxu0 %v217
    %v228 = vpop.f32.mrf.mxu0
    %v229 = vadd.f32 %v199, %v228
    %v230 = vpop.f32.mrf.mxu0
    %231 = vdwg.mxu0
    %v232 = vmax.f32 %v229, -10.0
    %v233 = vmin.f32 %v232, 2.0
    %v234 = vld [vmem:[%s3] sm:$0x3]
    %v235 = vmul.f32 %v233, 0.5
    %v236 = vmul.f32 %v235, 1.442695
    %v237 = vpow.pop %v236
    %239 = vrot.lane.b32.xlu0 %v237, 120
    %v240 = vpop.permute.xlu0 %239
    %v242 = vmul.f32 %v234, %v240
    %v243 = vadd.f32 %v229, %v242
    %245 = vrot.lane.b32.xlu0 %v229, 8
    %v246 = vpop.permute.xlu0 %245
    %249 = vrot.lane.b32.xlu0 %v233, 8
    %v250 = vpop.permute.xlu0 %249
    %vm252 = vcmask 64512
    %v253 = vsel %vm252, %v243, %v246
    %v254 = vsel %vm69, %v253, %v250
    %vm255 = vcmask 189440
    %256 = vst.msk [vmem:[%s10] sm:$0x3] %vm255, %v254
    %258 = vrot.lane.b32.xlu0 %v191, 32
    %v259 = vpop.permute.xlu0 %258
    %vm261 = vcmask 254976
    %262 = vst.msk [vmem:[%s11] sm:$0x3] %vm261, %v259
    %264 = vrot.lane.b32.xlu0 %v185, 96
    %v265 = vpop.permute.xlu0 %264
    %267 = vst.msk [vmem:[%s12] sm:$0x3] %vm261, %v265
    // Predicated region
    $region46: #{lstm_encoder_forward.1} parent=1 // pred_check
      _
    $region47: #{lstm_encoder_forward.1} parent=1 // pred_check_branch
      %269 = sbr.rel (0) target = $region49
    $region48: #{lstm_encoder_forward.1} parent=1 // pred_region
      _
    $region49: #{lstm_encoder_forward.1} parent=1 // pred_fallthru
      _
    // Predicated region
    $region50: #{lstm_encoder_forward.1} parent=1 // pred_check
      _
    $region51: #{lstm_encoder_forward.1} parent=1 // pred_check_branch
      %271 = sbr.rel (0) target = $region53
    $region52: #{lstm_encoder_forward.1} parent=1 // pred_region
      _
    $region53: #{lstm_encoder_forward.1} parent=1 // pred_fallthru
      _
    // Predicated region
    $region54: #{lstm_encoder_forward.1} parent=1 // pred_check
      _
    $region55: #{lstm_encoder_forward.1} parent=1 // pred_check_branch
      %273 = sbr.rel (0) target = $region57
    $region56: #{lstm_encoder_forward.1} parent=1 // pred_region
      _
    $region57: #{lstm_encoder_forward.1} parent=1 // pred_fallthru
      _
    // Predicated region
    $region58: #{lstm_encoder_forward.1} parent=1 // pred_check
      _
    $region59: #{lstm_encoder_forward.1} parent=1 // pred_check_branch
      %275 = sbr.rel (0) target = $region61
    $region60: #{lstm_encoder_forward.1} parent=1 // pred_region
      _
    $region61: #{lstm_encoder_forward.1} parent=1 // pred_fallthru
      _
    // Predicated region
    $region62: #{lstm_encoder_forward.1} parent=1 // pred_check
      _
    $region63: #{lstm_encoder_forward.1} parent=1 // pred_check_branch
      %277 = sbr.rel (0) target = $region65
    $region64: #{lstm_encoder_forward.1} parent=1 // pred_region
      _
    $region65: #{lstm_encoder_forward.1} parent=1 // pred_fallthru
      _
    // Predicated region
    $region66: #{lstm_encoder_forward.1} parent=1 // pred_check
      _
    $region67: #{lstm_encoder_forward.1} parent=1 // pred_check_branch
      %279 = sbr.rel (0) target = $region69
    $region68: #{lstm_encoder_forward.1} parent=1 // pred_region
      _
    $region69: #{lstm_encoder_forward.1} parent=1 // pred_fallthru
      _
    %280 = vsyncpa [#allocation3], 1

</llo_original>
